<compile_context>
chip_gen: v5e
topology: v5e:2x2
jax: 0.10.0
libtpu: 0.0.40
codegen_flags: <defaults>
</compile_context>

<pallas_src>
import functools
import math

import jax
import jax.numpy as jnp
from jax.experimental import pallas as pl
from jax.experimental.pallas import tpu as pltpu


def _round_up(x, m):
    return ((x + m - 1) // m) * m


def _simam_kernel(x_ref, o_ref, *, spatial, inv_spatial, inv_n, e_lambda):
    # x_ref: (rows_tile, spatial_padded) block in VMEM. Padded lanes/rows are
    # zero, contribute nothing to s1/s2, and their outputs are sliced off.
    x = x_ref[...].astype(jnp.float32)

    # Single-pass raw moments: both reductions issue together on the XLU and
    # zero padding is harmless.
    s1 = jnp.sum(x, axis=-1, keepdims=True)
    s2 = jnp.sum(x * x, axis=-1, keepdims=True)

    mu = s1 * inv_spatial
    sum_sq = s2 - spatial * mu * mu            # == sum((x - mu)^2) over true lanes

    # denom = 4 * (sum_sq / n + e_lambda); use a per-row reciprocal + per-element
    # multiply instead of a per-element divide. approx=False keeps it exact
    # (the kernel is HBM-bound, so exactness is free).
    denom = 4.0 * (sum_sq * inv_n + e_lambda)
    inv_denom = pl.reciprocal(denom, approx=False)

    xc = x - mu
    y = (xc * xc) * inv_denom + 0.5
    o_ref[...] = (x * jax.nn.sigmoid(y)).astype(o_ref.dtype)


def simam(x, e_lambda=0.0001, tile_bytes=2 * 1024 * 1024):
    """SimAM forward. Accepts 3-D (B,C,W), 4-D (B,C,H,W) or 5-D (B,C,L,H,W)."""
    sz = x.shape
    assert len(sz) in (3, 4, 5), "SimAM expects 3/4/5-D input"
    b, c = sz[0], sz[1]
    spatial = math.prod(sz[2:])
    assert spatial > 1, "SimAM needs more than one spatial element (n = spatial - 1)"
    n = spatial - 1
    rows = b * c

    # Flatten to (B*C, spatial): each row is an independent plane.
    x2d = x.reshape(rows, spatial)

    # Lane-dense padding of the spatial axis to a multiple of 128 (unmasked vst).
    spatial_p = _round_up(spatial, 128)
    if spatial_p != spatial:
        x2d = jnp.pad(x2d, ((0, 0), (0, spatial_p - spatial)))

    # Dtype-aware sublane multiple (packed sublane tile: 8 f32 / 16 bf16 / 32 int8).
    itemsize = jnp.dtype(x.dtype).itemsize
    sub = {1: 32, 2: 16}.get(itemsize, 8)

    # Rows per tile: target ~tile_bytes per block (mem-bound kernel; big tiles
    # amortize the ~0.35 us per-grid-step overhead), rounded to the sublane
    # multiple and clamped to the data size.
    bytes_per_row = spatial_p * itemsize
    rpt = max(1, tile_bytes // bytes_per_row)
    rpt = max(sub, (rpt // sub) * sub)
    rows_rounded = _round_up(rows, sub)
    rpt = min(rpt, rows_rounded)
    # v7x megacore: prefer >=2 grid steps so the "parallel" axis shards across
    # both TensorCores, when the row count allows it.
    if rpt >= rows_rounded and rows_rounded >= 2 * sub:
        rpt = _round_up(max(rows_rounded // 2, sub), sub)

    # Pad the row axis so the grid tiles cleanly for arbitrary B*C.
    rows_p = _round_up(rows, rpt)
    if rows_p != rows:
        x2d = jnp.pad(x2d, ((0, rows_p - rows), (0, 0)))
    grid = (rows_p // rpt,)

    kernel = functools.partial(
        _simam_kernel,
        spatial=float(spatial),
        inv_spatial=float(1.0 / spatial),
        inv_n=float(1.0 / n),
        e_lambda=float(e_lambda),
    )

    out2d = pl.pallas_call(
        kernel,
        out_shape=jax.ShapeDtypeStruct((rows_p, spatial_p), x.dtype),
        grid_spec=pltpu.PrefetchScalarGridSpec(
            num_scalar_prefetch=0,
            grid=grid,
            in_specs=[pl.BlockSpec((rpt, spatial_p), lambda i: (i, 0))],
            out_specs=pl.BlockSpec((rpt, spatial_p), lambda i: (i, 0)),
        ),
        compiler_params=pltpu.CompilerParams(
            dimension_semantics=("parallel",),
            # Explicit scoped-VMEM budget with headroom: 2 arrays x 2 pipeline
            # buffers x ~2 MiB tiles stays well under this on v5e/v6e/v7x.
            vmem_limit_bytes=32 * 1024 * 1024,
        ),
    )(x2d)

    return out2d[:rows, :spatial].reshape(sz)


def _simam_ref(x, e_lambda=0.0001):
    """Pure-JAX reference matching the PyTorch forward exactly."""
    sz = x.shape
    dims = tuple(range(2, len(sz)))
    n = math.prod(sz[2:]) - 1
    xf = x.astype(jnp.float32)
    mu = jnp.mean(xf, axis=dims, keepdims=True)
    square = (xf - mu) * (xf - mu)
    y = square / (4.0 * (jnp.sum(square, axis=dims, keepdims=True) / n + e_lambda)) + 0.5
    return (xf * jax.nn.sigmoid(y)).astype(x.dtype)


if __name__ == "__main__":
    key = jax.random.PRNGKey(0)
    k1, k2, k3 = jax.random.split(key, 3)

    # Case 1: NCHW f32, spatial already a multiple of 128.
    x1 = jax.random.normal(k1, (2, 4, 16, 16), dtype=jnp.float32)
    o1 = jax.block_until_ready(simam(x1))
    r1 = _simam_ref(x1)
    assert o1.shape == x1.shape
    assert jnp.allclose(o1, r1, atol=1e-4, rtol=1e-4), "mismatch vs reference (f32, 16x16)"

    # Case 2: non-128-multiple spatial (7x7) and ragged B*C (exercises padding).
    x2 = jax.random.normal(k2, (3, 5, 7, 7), dtype=jnp.float32)
    o2 = jax.block_until_ready(simam(x2))
    r2 = _simam_ref(x2)
    assert jnp.allclose(o2, r2, atol=1e-4, rtol=1e-4), "mismatch vs reference (f32, 7x7)"

    # Case 3: bf16 in / bf16 out (HBM traffic stays half-width).
    x3 = jax.random.normal(k3, (2, 4, 16, 16), dtype=jnp.bfloat16)
    o3 = jax.block_until_ready(simam(x3))
    r3 = _simam_ref(x3)
    assert jnp.allclose(o3.astype(jnp.float32), r3.astype(jnp.float32),
                        atol=2e-2, rtol=2e-2), "mismatch vs reference (bf16)"

    print("KERNEL_OK")
</pallas_src>

<mosaic_0001>
module attributes {stable_mosaic.version = 11 : i64} {
  func.func @_simam_kernel(%arg0: i32, %arg1: memref<8x256xf32, #tpu.memory_space<vmem>>, %arg2: memref<8x256xf32, #tpu.memory_space<vmem>>) attributes {dimension_semantics = [#tpu.dimension_semantics<parallel>], iteration_bounds = array<i64: 1>, scalar_prefetch = 0 : i64, scratch_operands = 0 : i64, tpu.core_type = #tpu.core_type<tc>, window_params = [{transform_indices = @transform_0, window_bounds = array<i64: 8, 256>}, {transform_indices = @transform_1, window_bounds = array<i64: 8, 256>}]} {
    %c0 = arith.constant 0 : index
    %c0_0 = arith.constant 0 : index
    %0 = vector.load %arg1[%c0, %c0_0] : memref<8x256xf32, #tpu.memory_space<vmem>>, vector<8x256xf32>
    %cst = arith.constant dense<0.000000e+00> : vector<8xf32>
    %1 = vector.multi_reduction <add>, %0, %cst [1] : vector<8x256xf32> to vector<8xf32>
    %2 = vector.shape_cast %1 : vector<8xf32> to vector<8x1xf32>
    %3 = arith.mulf %0, %0 : vector<8x256xf32>
    %cst_1 = arith.constant dense<0.000000e+00> : vector<8xf32>
    %4 = vector.multi_reduction <add>, %3, %cst_1 [1] : vector<8x256xf32> to vector<8xf32>
    %5 = vector.shape_cast %4 : vector<8xf32> to vector<8x1xf32>
    %cst_2 = arith.constant 3.906250e-03 : f32
    %6 = vector.broadcast %cst_2 : f32 to vector<8x1xf32>
    %7 = arith.mulf %2, %6 : vector<8x1xf32>
    %cst_3 = arith.constant 2.560000e+02 : f32
    %8 = vector.broadcast %cst_3 : f32 to vector<8x1xf32>
    %9 = arith.mulf %8, %7 : vector<8x1xf32>
    %10 = arith.mulf %9, %7 : vector<8x1xf32>
    %11 = arith.subf %5, %10 : vector<8x1xf32>
    %cst_4 = arith.constant 0.00392156886 : f32
    %12 = vector.broadcast %cst_4 : f32 to vector<8x1xf32>
    %13 = arith.mulf %11, %12 : vector<8x1xf32>
    %cst_5 = arith.constant 9.99999974E-5 : f32
    %14 = vector.broadcast %cst_5 : f32 to vector<8x1xf32>
    %15 = arith.addf %13, %14 : vector<8x1xf32>
    %cst_6 = arith.constant 4.000000e+00 : f32
    %16 = vector.broadcast %cst_6 : f32 to vector<8x1xf32>
    %17 = arith.mulf %16, %15 : vector<8x1xf32>
    %18 = tpu.reciprocal %17 : vector<8x1xf32> -> vector<8x1xf32>
    %19 = vector.broadcast %7 : vector<8x1xf32> to vector<8x256xf32>
    %20 = arith.subf %0, %19 : vector<8x256xf32>
    %21 = arith.mulf %20, %20 : vector<8x256xf32>
    %22 = vector.broadcast %18 : vector<8x1xf32> to vector<8x256xf32>
    %23 = arith.mulf %21, %22 : vector<8x256xf32>
    %cst_7 = arith.constant 5.000000e-01 : f32
    %24 = vector.broadcast %cst_7 : f32 to vector<8x256xf32>
    %25 = arith.addf %23, %24 : vector<8x256xf32>
    %26 = arith.negf %25 : vector<8x256xf32>
    %27 = math.exp %26 : vector<8x256xf32>
    %cst_8 = arith.constant 1.000000e+00 : f32
    %28 = vector.broadcast %cst_8 : f32 to vector<8x256xf32>
    %29 = arith.addf %28, %27 : vector<8x256xf32>
    %30 = arith.divf %28, %29 : vector<8x256xf32>
    %31 = arith.mulf %0, %30 : vector<8x256xf32>
    %c0_9 = arith.constant 0 : index
    %c0_10 = arith.constant 0 : index
    %32 = vector.load %arg2[%c0_9, %c0_10] : memref<8x256xf32, #tpu.memory_space<vmem>>, vector<8x256xf32>
    tpu.vector_store %arg2[%c0_9, %c0_10], %31 {strides = array<i32>} : memref<8x256xf32, #tpu.memory_space<vmem>>, vector<8x256xf32>,
    return
  }
  func.func @transform_0(%arg0: i32) -> (i32, i32) {
    %c0_i32 = arith.constant 0 : i32
    %c0_i32_0 = arith.constant 0 : i32
    return %arg0, %c0_i32 : i32, i32
  }
  func.func @transform_1(%arg0: i32) -> (i32, i32) {
    %c0_i32 = arith.constant 0 : i32
    %c0_i32_0 = arith.constant 0 : i32
    return %arg0, %c0_i32 : i32, i32
  }
}

</mosaic_0001>

<llo_original>
// kernel: tpu_custom_call.1
$region0: #{tpu_custom_call.1}
  #allocation0 [shape = 'u32[]', space=smem, size = 0x4, offset = 0x4, fixed_abs, tag = 'smem constant byte address 0x4 - core index']
  #allocation1 [shape = 'u32[72,128]{1,0:T(1,128)}', space=vmem, size = 0x9000, scoped, tag = 'internal scratch']
  %s0 = inlined_call_operand.hbm [shape: f32[8,256], index: 0, kind: input, shape index: {}]
  %s1 = inlined_call_operand.hbm [shape: f32[8,256], index: 1, kind: output, shape index: {}]
  %s2 = sld [smem:[#allocation0]]
  $region18: #{tpu_custom_call.1} parent=0
    _
  %s4 = ssub.s32 1, %s2
  %s5 = scalar_select 0, %s4, %s2
  $region1: #{tpu_custom_call.1} parent=0
    #allocation2 [shape = 'u8[8192]{0}', space=vmem, size = 0x2000, scoped, tag = 'input window, operand 0, single buffered']
    #allocation3 [shape = 's32[1]{0}', space=sflag, size = 0x4, scoped, tag = 'scoped memory for tpu_custom_call.1']
    #allocation4 [shape = 's32[1]{0}', space=sflag, size = 0x4, scoped, tag = 'scoped memory for tpu_custom_call.1']
    #allocation5 [shape = 'u8[8192]{0}', space=vmem, size = 0x2000, scoped, tag = 'output window, operand 0, single buffered']
    %6 = vsyncpa [#allocation3], 0
    %7 = vsyncpa [#allocation4], 0
    // Predicated region
    $region2: #{tpu_custom_call.1} parent=1 // pred_check
      _
    $region3: #{tpu_custom_call.1} parent=1 // pred_check_branch
      %9 = sbr.rel (0) target = $region5
    $region4: #{tpu_custom_call.1} parent=1 // pred_region
      %11 = vsyncadd [#allocation3], 0
      %s13 = sshll.u32 %s0, 4
      %s14 = int_to_ptr.hbm [resolvable:$true] %s13
      %s15 = sshll.u32 [#allocation2], 4
      %s16 = int_to_ptr.vmem [resolvable:$true] %s15
      %18 = dma.hbm_to_vmem [thread:$0]  %s14, 256, %s16, [#allocation3]
    $region5: #{tpu_custom_call.1} parent=1 // pred_fallthru
      _
    // Predicated region
    $region6: #{tpu_custom_call.1} parent=1 // pred_check
      _
    $region7: #{tpu_custom_call.1} parent=1 // pred_check_branch
      %20 = sbr.rel (0) target = $region9
    $region8: #{tpu_custom_call.1} parent=1 // pred_region
      %22 = dma.done [#allocation3], 256
    $region9: #{tpu_custom_call.1} parent=1 // pred_fallthru
      _
    %v23 = vld [vmem:[#allocation2] sm:$0xff]
    %v24 = vld [vmem:[#allocation2 + $0x8] sm:$0xff]
    %v25 = vadd.f32 %v23, %v24
    %26 = vadd.xlane.f32.xlu0 %v25
    %v27 = vpop.xlane.xlu0 %26
    %v28 = vmul.f32 %v23, %v23
    %v29 = vmul.f32 %v24, %v24
    %v30 = vadd.f32 %v28, %v29
    %31 = vadd.xlane.f32.xlu0 %v30
    %v32 = vpop.xlane.xlu0 %31
    %v33 = vmul.f32 %v27, 0.00390625
    %v34 = vmul.f32 %v33, 256.0
    %v35 = vmul.f32 %v34, %v33
    %v36 = vsub.f32 %v32, %v35
    %v37 = vmul.f32 %v36, 0.003921569
    %v38 = vadd.f32 %v37, 0.0001
    %v39 = vmul.f32 %v38, 4.0
    %v40 = vrcp.pop %v39
    %v41 = vmul.f32 %v39, %v40
    %v42 = vsub.f32 1.0, %v41
    %v43 = vmul.f32 %v40, %v42
    %v44 = vadd.f32 %v40, %v43
    %vm45 = vweird.f32 %v39
    %vm46 = vweird.f32 %v40
    %vm47 = vmor %vm45, %vm46
    %v48 = vsel %vm47, %v40, %v44
    %v49 = vand.u32 2147483647, %v39
    %vm50 = vcmp.eq.f32.partialorder %v49, 8.507059e+37
    %v51 = vand.u32 %v39, 2147483648
    %v52 = vor.u32 1.1754944e-38, %v51
    %v53 = vsel %vm50, %v52, %v48
    %v54 = vsub.f32 %v23, %v33
    %v55 = vsub.f32 %v24, %v33
    %v56 = vmul.f32 %v54, %v54
    %v57 = vmul.f32 %v55, %v55
    %v58 = vmul.f32 %v56, %v53
    %v59 = vmul.f32 %v57, %v53
    %v60 = vadd.f32 %v58, 0.5
    %v61 = vadd.f32 %v59, 0.5
    %v62 = vxor.u32 %v60, 2147483648
    %v63 = vxor.u32 %v61, 2147483648
    %v64 = vmul.f32 %v62, 1.442695
    %v65 = vpow.pop %v64
    %v66 = vmul.f32 %v63, 1.442695
    %v67 = vpow.pop %v66
    %v68 = vadd.f32 %v65, 1.0
    %v69 = vadd.f32 %v67, 1.0
    %v70 = vrcp.pop %v68
    %v71 = vmul.f32 %v68, %v70
    %v72 = vsub.f32 1.0, %v71
    %v73 = vmul.f32 %v70, %v72
    %v74 = vadd.f32 %v70, %v73
    %vm75 = vweird.f32 %v68
    %vm76 = vweird.f32 %v70
    %vm77 = vmor %vm75, %vm76
    %v78 = vsel %vm77, %v70, %v74
    %v79 = vand.u32 2147483647, %v68
    %vm80 = vcmp.eq.f32.partialorder %v79, 8.507059e+37
    %v81 = vand.u32 %v68, 2147483648
    %v82 = vor.u32 1.1754944e-38, %v81
    %v83 = vsel %vm80, %v82, %v78
    %v84 = vmul.f32 1.0, %v83
    %v85 = vrcp.pop %v69
    %v86 = vmul.f32 %v69, %v85
    %v87 = vsub.f32 1.0, %v86
    %v88 = vmul.f32 %v85, %v87
    %v89 = vadd.f32 %v85, %v88
    %vm90 = vweird.f32 %v69
    %vm91 = vweird.f32 %v85
    %vm92 = vmor %vm90, %vm91
    %v93 = vsel %vm92, %v85, %v89
    %v94 = vand.u32 2147483647, %v69
    %vm95 = vcmp.eq.f32.partialorder %v94, 8.507059e+37
    %v96 = vand.u32 %v69, 2147483648
    %v97 = vor.u32 1.1754944e-38, %v96
    %v98 = vsel %vm95, %v97, %v93
    %v99 = vmul.f32 1.0, %v98
    %v100 = vmul.f32 %v23, %v84
    %v101 = vmul.f32 %v24, %v99
    %102 = vst [vmem:[#allocation5] sm:$0xff] %v100
    %103 = vst [vmem:[#allocation5 + $0x8] sm:$0xff] %v101
    // Predicated region
    $region10: #{tpu_custom_call.1} parent=1 // pred_check
      _
    $region11: #{tpu_custom_call.1} parent=1 // pred_check_branch
      %105 = sbr.rel (0) target = $region13
    $region12: #{tpu_custom_call.1} parent=1 // pred_region
      %107 = vsyncadd [#allocation4], 0
      %s109 = sshll.u32 [#allocation5], 4
      %s110 = int_to_ptr.vmem [resolvable:$true] %s109
      %s111 = sshll.u32 %s1, 4
      %s112 = int_to_ptr.hbm [resolvable:$true] %s111
      %114 = dma.vmem_to_hbm [thread:$0]  %s110, 256, %s112, [#allocation4]
    $region13: #{tpu_custom_call.1} parent=1 // pred_fallthru
      _
    // Predicated region
    $region14: #{tpu_custom_call.1} parent=1 // pred_check
      _
    $region15: #{tpu_custom_call.1} parent=1 // pred_check_branch
      %116 = sbr.rel (0) target = $region17
    $region16: #{tpu_custom_call.1} parent=1 // pred_region
      %118 = dma.done [#allocation4], 256
    $region17: #{tpu_custom_call.1} parent=1 // pred_fallthru
      _
    %119 = vsyncpa [#allocation3], 1
    %120 = vsyncpa [#allocation4], 1

</llo_original>
